<compile_context>
chip_gen: v7x
topology: tpu7x:2x2x1
jax: 0.10.0
libtpu: 0.0.40
codegen_flags: <defaults>
</compile_context>

<pallas_src>
import jax
import jax.numpy as jnp
from jax.experimental import pallas as pl
from jax.experimental.pallas import tpu as pltpu

N_P = 19
N_P_SPECIAL = 1 + 8 * 4          # 33
N_POLICY = N_P + N_P_SPECIAL     # 52 (torch.cat([p, p2], -1))
N_OUT = N_POLICY + 1 + 1         # 54 = policy + value + reward
PAD_OUT = 128                    # lane-dense output width (unmasked stores)

# Conservative per-call VMEM budget for the double-buffered tiled path.  Fits
# v5e's 16 MiB scoped default with headroom, therefore also v6e (32 MiB) and
# v7x (32 MiB scoped / 64 MiB physical).
_VMEM_BUDGET_BYTES = 12 * 1024 * 1024
_MAX_TM = 8192                   # per-step row cap (keeps per-step DMA >> 0.35us overhead)
_GRIDLESS_MAX_ROWS = 512         # only stay grid-less for genuinely tiny batches


def football_head_kernel(x_ref, w_ref, b_ref, o_ref):
    # One fused MXU matmul for all heads (f32 accumulation) + a single bias-row add.
    o_ref[...] = (
        jnp.dot(x_ref[...], w_ref[...], preferred_element_type=jnp.float32)
        + b_ref[...]
    ).astype(o_ref.dtype)


def prepare_football_head_params(w_p, w_p_special, w_v, b_v, w_r, *, dtype=jnp.bfloat16):
    """One-time (init-time) fusion of the four PyTorch (out, F) weights.

    Returns:
      w_fused: (F, PAD_OUT) in `dtype`.
               Columns: [policy(19) | policy_special(33) | value | reward | zero-pad].
      b_fused: (1, PAD_OUT) float32, zeros except the value column (holds b_v).
    """
    w_all = jnp.concatenate([w_p, w_p_special, w_v, w_r], axis=0).astype(jnp.float32)  # (54, F)
    f = w_all.shape[1]
    w_fused = (
        jnp.zeros((f, PAD_OUT), dtype=jnp.float32).at[:, :N_OUT].set(w_all.T).astype(dtype)
    )
    b_fused = jnp.zeros((1, PAD_OUT), dtype=jnp.float32).at[0, N_POLICY].set(
        jnp.asarray(b_v, dtype=jnp.float32).reshape(-1)[0]
    )
    return w_fused, b_fused


def _pick_tile(rows, feat, in_itemsize, out_itemsize):
    """Largest tm (multiple of 16, <= _MAX_TM) fitting the double-buffer VMEM budget,
    with at least 2 grid steps so v7x's second TensorCore gets work."""
    per_row = 2 * (feat * in_itemsize + PAD_OUT * out_itemsize)  # double-buffered in+out
    cap = (_VMEM_BUDGET_BYTES // per_row) // 16 * 16
    cap = max(16, min(cap, _MAX_TM))
    half = (-(-rows // 2) + 15) // 16 * 16                       # round_up(ceil(rows/2), 16)
    return max(16, min(cap, half))


def football_head_fused(x, w_fused, b_fused, *, out_dtype=None, tm=None):
    """x: (B, F). Returns the fused (B, PAD_OUT) output slab (no post-kernel slicing)."""
    B, F = x.shape
    compute_dtype = w_fused.dtype
    if x.dtype != compute_dtype:
        x = x.astype(compute_dtype)              # shrink the HBM read for bf16 weights
    if out_dtype is None:
        out_dtype = compute_dtype                # bf16 slab by default: output write dominates
    out_shape = jax.ShapeDtypeStruct((B, PAD_OUT), out_dtype)

    in_itemsize = jnp.dtype(compute_dtype).itemsize
    out_itemsize = jnp.dtype(out_dtype).itemsize
    cost = pl.CostEstimate(
        flops=2 * B * F * PAD_OUT,
        transcendentals=0,
        bytes_accessed=(B * F * in_itemsize
                        + F * PAD_OUT * in_itemsize
                        + PAD_OUT * 4
                        + B * PAD_OUT * out_itemsize),
    )

    if tm is None and B <= _GRIDLESS_MAX_ROWS:
        # Tiny batch: grid-less single invocation (no pipeline bookkeeping).
        vmem = pl.BlockSpec(memory_space=pltpu.MemorySpace.VMEM)
        return pl.pallas_call(
            football_head_kernel,
            in_specs=[vmem, vmem, vmem],
            out_specs=vmem,
            out_shape=out_shape,
            cost_estimate=cost,
        )(x, w_fused, b_fused)

    if tm is None:
        tm = _pick_tile(B, F, in_itemsize, out_itemsize)
    tm = max(16, (int(tm) // 16) * 16)           # multiple of 16 (bf16 sublane packing)

    grid = (pl.cdiv(B, tm),)                     # partial tail block handled by Pallas
    return pl.pallas_call(
        football_head_kernel,
        grid=grid,
        in_specs=[
            pl.BlockSpec((tm, F), lambda i: (i, 0)),
            pl.BlockSpec((F, PAD_OUT), lambda i: (0, 0)),
            pl.BlockSpec((1, PAD_OUT), lambda i: (0, 0)),
        ],
        out_specs=pl.BlockSpec((tm, PAD_OUT), lambda i: (i, 0)),
        out_shape=out_shape,
        compiler_params=pltpu.CompilerParams(
            dimension_semantics=("parallel",)),
        cost_estimate=cost,
    )(x, w_fused, b_fused)


def split_football_head_outputs(out):
    """Slice the fused slab into (policy (B,52), v (B,1), r (B,1)).

    Kept separate from the pallas_call so the slices fuse into downstream
    consumers under jit instead of materializing three extra HBM copies."""
    policy = out[:, :N_POLICY]
    v = out[:, N_POLICY:N_POLICY + 1]
    r = out[:, N_POLICY + 1:N_POLICY + 2]
    return policy, v, r


def football_head(x, w_fused, b_fused, *, out_dtype=None, tm=None):
    out = football_head_fused(x, w_fused, b_fused, out_dtype=out_dtype, tm=tm)
    return split_football_head_outputs(out)


def football_head_ref(x, w_p, w_p_special, w_v, b_v, w_r):
    p = x @ w_p.T
    p2 = x @ w_p_special.T
    v = x @ w_v.T + b_v
    r = x @ w_r.T
    return jnp.concatenate([p, p2], axis=-1), v, r


if __name__ == "__main__":
    B, FILTERS = 8, 32

    key = jax.random.PRNGKey(0)
    kx, kp, kps, kv, kbv, kr = jax.random.split(key, 6)

    # Deterministic synthetic parameters (PyTorch Linear shapes: (out, in)).
    bound = 1.0 / (FILTERS ** 0.5)
    x = jax.random.normal(kx, (B, FILTERS), dtype=jnp.float32)
    w_p = jax.random.uniform(kp, (N_P, FILTERS), minval=-bound, maxval=bound)
    w_p_special = jax.random.uniform(kps, (N_P_SPECIAL, FILTERS), minval=-bound, maxval=bound)
    w_v = jax.random.uniform(kv, (1, FILTERS), minval=-bound, maxval=bound)
    b_v = jax.random.uniform(kbv, (1,), minval=-bound, maxval=bound)
    w_r = jax.random.uniform(kr, (1, FILTERS), minval=-bound, maxval=bound)

    policy_ref, v_ref, r_ref = football_head_ref(x, w_p, w_p_special, w_v, b_v, w_r)

    # --- Exact f32 path (tight tolerances). ---------------------------------
    w_f32, b_f32 = prepare_football_head_params(w_p, w_p_special, w_v, b_v, w_r,
                                                dtype=jnp.float32)
    policy, v, r = football_head(x, w_f32, b_f32, out_dtype=jnp.float32)
    jax.block_until_ready((policy, v, r))
    assert policy.shape == (B, N_POLICY) and v.shape == (B, 1) and r.shape == (B, 1)
    assert jnp.allclose(policy, policy_ref, atol=1e-5, rtol=1e-5)
    assert jnp.allclose(v, v_ref, atol=1e-5, rtol=1e-5)
    assert jnp.allclose(r, r_ref, atol=1e-5, rtol=1e-5)

    # --- Default bf16 path (halved HBM bytes; f32 accumulation). ------------
    w_bf16, b_bf16 = prepare_football_head_params(w_p, w_p_special, w_v, b_v, w_r)
    w_bf16, b_bf16 = jax.block_until_ready((w_bf16, b_bf16))
    policy_b, v_b, r_b = football_head(x, w_bf16, b_bf16)
    jax.block_until_ready((policy_b, v_b, r_b))
    assert policy_b.dtype == jnp.bfloat16
    assert jnp.allclose(policy_b.astype(jnp.float32), policy_ref, atol=5e-2, rtol=5e-2)
    assert jnp.allclose(v_b.astype(jnp.float32), v_ref, atol=5e-2, rtol=5e-2)
    assert jnp.allclose(r_b.astype(jnp.float32), r_ref, atol=5e-2, rtol=5e-2)

    # --- Tiled path with a non-divisible batch (partial tail block). --------
    B2 = 40
    x2 = jax.random.normal(jax.random.PRNGKey(1), (B2, FILTERS), dtype=jnp.float32)
    policy2_ref, v2_ref, r2_ref = football_head_ref(x2, w_p, w_p_special, w_v, b_v, w_r)
    policy2, v2, r2 = football_head(x2, w_f32, b_f32, out_dtype=jnp.float32, tm=16)
    jax.block_until_ready((policy2, v2, r2))
    assert policy2.shape == (B2, N_POLICY)
    assert jnp.allclose(policy2, policy2_ref, atol=1e-5, rtol=1e-5)
    assert jnp.allclose(v2, v2_ref, atol=1e-5, rtol=1e-5)
    assert jnp.allclose(r2, r2_ref, atol=1e-5, rtol=1e-5)

    print("KERNEL_OK")
</pallas_src>

<mosaic_0001>
module attributes {stable_mosaic.version = 11 : i64} {
  func.func @football_head_kernel(%arg0: memref<8x32xf32, #tpu.memory_space<vmem>>, %arg1: memref<32x128xf32, #tpu.memory_space<vmem>>, %arg2: memref<1x128xf32, #tpu.memory_space<vmem>>, %arg3: memref<8x128xf32, #tpu.memory_space<vmem>>) attributes {dimension_semantics = [], scalar_prefetch = 0 : i64, scratch_operands = 0 : i64, tpu.core_type = #tpu.core_type<tc>} {
    %c0 = arith.constant 0 : index
    %c0_0 = arith.constant 0 : index
    %0 = vector.load %arg0[%c0, %c0_0] : memref<8x32xf32, #tpu.memory_space<vmem>>, vector<8x32xf32>
    %c0_1 = arith.constant 0 : index
    %c0_2 = arith.constant 0 : index
    %1 = vector.load %arg1[%c0_1, %c0_2] : memref<32x128xf32, #tpu.memory_space<vmem>>, vector<32x128xf32>
    %cst = arith.constant dense<0.000000e+00> : vector<8x128xf32>
    %2 = tpu.matmul %0, %1, %cst {dimension_numbers = #tpu.dot_dimension_numbers<[1], [0], [0], [1], [0, 0, 1, 1], [], []>} : vector<8x32xf32>, vector<32x128xf32>, vector<8x128xf32> -> vector<8x128xf32>
    %c0_3 = arith.constant 0 : index
    %c0_4 = arith.constant 0 : index
    %3 = vector.load %arg2[%c0_3, %c0_4] : memref<1x128xf32, #tpu.memory_space<vmem>>, vector<1x128xf32>
    %4 = vector.broadcast %3 : vector<1x128xf32> to vector<8x128xf32>
    %5 = arith.addf %2, %4 : vector<8x128xf32>
    %c0_5 = arith.constant 0 : index
    %c0_6 = arith.constant 0 : index
    %6 = vector.load %arg3[%c0_5, %c0_6] : memref<8x128xf32, #tpu.memory_space<vmem>>, vector<8x128xf32>
    tpu.vector_store %arg3[%c0_5, %c0_6], %5 {strides = array<i32>} : memref<8x128xf32, #tpu.memory_space<vmem>>, vector<8x128xf32>,
    return
  }
}

</mosaic_0001>

<llo_original>
// kernel: tpu_custom_call.1
$region0: #{tpu_custom_call.1}
  #allocation0 [shape = 'u32[]', space=smem, size = 0x4, offset = 0x4, fixed_abs, tag = 'smem constant byte address 0x4 - core index']
  #allocation1 [shape = 'u32[144,128]{1,0:T(1,128)}', space=vmem, size = 0x12000, scoped, tag = 'internal scratch']
  %s0 = inlined_call_operand.hbm [shape: f32[8,32], index: 0, kind: input, shape index: {}]
  %s1 = inlined_call_operand.hbm [shape: f32[32,128], index: 1, kind: input, shape index: {}]
  %s2 = inlined_call_operand.vmem [shape: f32[1,128], index: 2, kind: input, shape index: {}]
  %s3 = inlined_call_operand.hbm [shape: f32[8,128], index: 3, kind: output, shape index: {}]
  %s4 = sld [smem:[#allocation0]]
  $region30: #{tpu_custom_call.1} parent=0
    _
  %s6 = ssub.s32 1, %s4
  %s7 = scalar_select 0, %s6, %s4
  $region1: #{tpu_custom_call.1} parent=0
    #allocation2 [shape = 'u8[4096]{0}', space=vmem, size = 0x1000, scoped, tag = 'input window, operand 0, single buffered']
    #allocation3 [shape = 's32[1]{0}', space=sflag, size = 0x4, scoped, tag = 'scoped memory for tpu_custom_call.1']
    #allocation4 [shape = 's32[1]{0}', space=sflag, size = 0x4, scoped, tag = 'scoped memory for tpu_custom_call.1']
    #allocation5 [shape = 'u8[16384]{0}', space=vmem, size = 0x4000, scoped, tag = 'input window, operand 1, single buffered']
    #allocation6 [shape = 's32[1]{0}', space=sflag, size = 0x4, scoped, tag = 'scoped memory for tpu_custom_call.1']
    #allocation7 [shape = 'u8[4096]{0}', space=vmem, size = 0x1000, scoped, tag = 'output window, operand 0, single buffered']
    %8 = vsyncpa [#allocation3], 0
    %9 = vsyncpa [#allocation6], 0
    %10 = vsyncpa [#allocation4], 0
    // Predicated region
    $region2: #{tpu_custom_call.1} parent=1 // pred_check
      _
    $region3: #{tpu_custom_call.1} parent=1 // pred_check_branch
      %12 = sbr.rel (0) target = $region5
    $region4: #{tpu_custom_call.1} parent=1 // pred_region
      %s14 = ssub.s32 128, 128
      %15 = vsyncadd [#allocation3], %s14
      %s17 = sshll.u32 [#allocation2], 4
      %s18 = int_to_ptr.vmem [resolvable:$true] %s17
      %20 = dma.hbm_to_vmem [thread:$0]  %s0, 128, %s18, [#allocation3]
    $region5: #{tpu_custom_call.1} parent=1 // pred_fallthru
      _
    // Predicated region
    $region6: #{tpu_custom_call.1} parent=1 // pred_check
      _
    $region7: #{tpu_custom_call.1} parent=1 // pred_check_branch
      %22 = sbr.rel (0) target = $region9
    $region8: #{tpu_custom_call.1} parent=1 // pred_region
      %s24 = ssub.s32 512, 512
      %25 = vsyncadd [#allocation6], %s24
      %s26 = sshll.u32 [#allocation5], 4
      %s27 = int_to_ptr.vmem [resolvable:$true] %s26
      %32 = dma.hbm_to_vmem [thread:$0]  %s1, 512, %s27, [#allocation6], 128, 128, 8
    $region9: #{tpu_custom_call.1} parent=1 // pred_fallthru
      _
    // Predicated region
    $region10: #{tpu_custom_call.1} parent=1 // pred_check
      _
    $region11: #{tpu_custom_call.1} parent=1 // pred_check_branch
      %34 = sbr.rel (0) target = $region13
    $region12: #{tpu_custom_call.1} parent=1 // pred_region
      _
    $region13: #{tpu_custom_call.1} parent=1 // pred_fallthru
      _
    // Predicated region
    $region14: #{tpu_custom_call.1} parent=1 // pred_check
      _
    $region15: #{tpu_custom_call.1} parent=1 // pred_check_branch
      %36 = sbr.rel (0) target = $region17
    $region16: #{tpu_custom_call.1} parent=1 // pred_region
      %37 = dma.done [#allocation3], 128
    $region17: #{tpu_custom_call.1} parent=1 // pred_fallthru
      _
    // Predicated region
    $region18: #{tpu_custom_call.1} parent=1 // pred_check
      _
    $region19: #{tpu_custom_call.1} parent=1 // pred_check_branch
      %39 = sbr.rel (0) target = $region21
    $region20: #{tpu_custom_call.1} parent=1 // pred_region
      %40 = dma.done [#allocation6], 512
    $region21: #{tpu_custom_call.1} parent=1 // pred_fallthru
      _
    %v41 = vld [vmem:[#allocation2] sm:$0xff]
    %v42 = vld [vmem:[#allocation5] sm:$0xff]
    %v43 = vld [vmem:[#allocation5 + $0x8] sm:$0xff]
    %v44 = vld [vmem:[#allocation5 + $0x10] sm:$0xff]
    %v45 = vld [vmem:[#allocation5 + $0x18] sm:$0xff]
    %v46 = vld [vmem:[%s2] sm:$0x1]
    %v48 = vlaneseq
    %v49 = vshrl.u32 %v48, 7
    %v50 = vsub.s32 0, %v49
    %v51 = vrot.slane %v46, %v50
    %vm53 = vcmask 261120
    %v55 = vsel %vm53, %v41, 0
    %57 = vmatprep.subr.mxu0 0.0
    %58 = vmatpush1.msra.mxu0 %v42
    %59 = vmatprep.subr.mxu0 0.0
    %60 = vmatpush1.msra.mxu0 %v43
    %61 = vmatprep.subr.mxu0 0.0
    %62 = vmatpush1.msra.mxu0 %v44
    %63 = vmatprep.subr.mxu0 0.0
    %64 = vmatpush1.msra.mxu0 %v45
    %65 = vmatprep.subr.mxu0 0.0
    %66 = vmatpush1.msra.mxu0 0.0
    %67 = vmatprep.subr.mxu0 0.0
    %68 = vmatpush1.msra.mxu0 0.0
    %69 = vmatprep.subr.mxu0 0.0
    %70 = vmatpush1.msra.mxu0 0.0
    %71 = vmatprep.subr.mxu0 0.0
    %72 = vmatpush1.msra.mxu0 0.0
    %73 = vmatprep.subr.mxu0 0.0
    %74 = vmatpush1.msra.mxu0 0.0
    %75 = vmatprep.subr.mxu0 0.0
    %76 = vmatpush1.msra.mxu0 0.0
    %77 = vmatprep.subr.mxu0 0.0
    %78 = vmatpush1.msra.mxu0 0.0
    %79 = vmatprep.subr.mxu0 0.0
    %80 = vmatpush1.msra.mxu0 0.0
    %81 = vmatprep.subr.mxu0 0.0
    %82 = vmatpush1.msra.mxu0 0.0
    %83 = vmatprep.subr.mxu0 0.0
    %84 = vmatpush1.msra.mxu0 0.0
    %85 = vmatprep.subr.mxu0 0.0
    %86 = vmatpush1.msra.mxu0 0.0
    %87 = vmatprep.subr.mxu0 0.0
    %88 = vmatpush1.msra.mxu0 0.0
    %89 = vmatprep.subr.mxu0 0.0
    %90 = vmatpush1.msra.mxu0 0.0
    %91 = vmatprep.subr.mxu0 0.0
    %92 = vmatpush1.msra.mxu0 0.0
    %93 = vmatprep.subr.mxu0 0.0
    %94 = vmatpush1.msra.mxu0 0.0
    %95 = vmatprep.subr.mxu0 0.0
    %96 = vmatpush1.msra.mxu0 0.0
    %97 = vmatprep.subr.mxu0 0.0
    %98 = vmatpush1.msra.mxu0 0.0
    %99 = vmatprep.subr.mxu0 0.0
    %100 = vmatpush1.msra.mxu0 0.0
    %101 = vmatprep.subr.mxu0 0.0
    %102 = vmatpush1.msra.mxu0 0.0
    %103 = vmatprep.subr.mxu0 0.0
    %104 = vmatpush1.msra.mxu0 0.0
    %105 = vmatprep.subr.mxu0 0.0
    %106 = vmatpush1.msra.mxu0 0.0
    %107 = vmatprep.subr.mxu0 0.0
    %108 = vmatpush1.msra.mxu0 0.0
    %109 = vmatprep.subr.mxu0 0.0
    %110 = vmatpush1.msra.mxu0 0.0
    %111 = vmatprep.subr.mxu0 0.0
    %112 = vmatpush1.msra.mxu0 0.0
    %113 = vmatprep.subr.mxu0 0.0
    %114 = vmatpush1.msra.mxu0 0.0
    %115 = vmatprep.subr.mxu0 0.0
    %116 = vmatpush1.msra.mxu0 0.0
    %117 = vmatprep.subr.mxu0 0.0
    %118 = vmatpush1.msra.mxu0 0.0
    %119 = vmatprep.subr.mxu0 0.0
    %120 = vmatpush1.msra.mxu0 0.0
    %121 = vmatprep.mubr.f32.mxu0 0.0
    %122 = vmatmul.mubr.f32.gmra.mrb[0].mxu0 %v55
    %v123 = vpop.f32.mrb[0].mxu0
    %v124 = vadd.f32 %v51, %v123
    %v125 = vpop.f32.mrb[0].mxu0
    %126 = vdwg.mxu0
    %127 = vst [vmem:[#allocation7] sm:$0xff] %v124
    // Predicated region
    $region22: #{tpu_custom_call.1} parent=1 // pred_check
      _
    $region23: #{tpu_custom_call.1} parent=1 // pred_check_branch
      %129 = sbr.rel (0) target = $region25
    $region24: #{tpu_custom_call.1} parent=1 // pred_region
      %s131 = ssub.s32 128, 128
      %132 = vsyncadd [#allocation4], %s131
      %s134 = sshll.u32 [#allocation7], 4
      %s135 = int_to_ptr.vmem [resolvable:$true] %s134
      %137 = dma.vmem_to_hbm [thread:$0]  %s135, 128, %s3, [#allocation4]
    $region25: #{tpu_custom_call.1} parent=1 // pred_fallthru
      _
    // Predicated region
    $region26: #{tpu_custom_call.1} parent=1 // pred_check
      _
    $region27: #{tpu_custom_call.1} parent=1 // pred_check_branch
      %139 = sbr.rel (0) target = $region29
    $region28: #{tpu_custom_call.1} parent=1 // pred_region
      %140 = dma.done [#allocation4], 128
    $region29: #{tpu_custom_call.1} parent=1 // pred_fallthru
      _
    %141 = vsyncpa [#allocation3], 1
    %142 = vsyncpa [#allocation6], 1
    %143 = vsyncpa [#allocation4], 1

</llo_original>
